<compile_context>
chip_gen: v7x
topology: tpu7x:2x2x1
jax: 0.10.0
libtpu: 0.0.40
codegen_flags: <defaults>
</compile_context>

<pallas_src>
import functools

import jax
import jax.numpy as jnp
from jax.experimental import pallas as pl
from jax.experimental.pallas import tpu as pltpu


def _round_up(x, m):
    return (x + m - 1) // m * m


def _scatter_sum_kernel(lo_ref, hi_ref, rows_ref, x_ref, out_ref, acc_ref,
                        *, n_edges, nodes_on_lanes):
    """One (node-block, edge-chunk) grid step of the segment sum.

    lo_ref/hi_ref: (num_node_blocks,) int32 SMEM — first/last edge-chunk index
                   containing edges for each node block (hi < lo => no edges).
    rows_ref: (1, tE)  int32  sorted destination row per edge in this chunk.
    x_ref:    (D, tE)  float  edge feature values for this chunk (sorted order).
    out_ref / acc_ref:
        nodes_on_lanes=True : (D, tN)  (node index on the 128-wide lane axis)
        nodes_on_lanes=False: (tN, D)  (feature dim on lanes; used when D >= 128)
    """
    n = pl.program_id(0)          # node-block axis ("parallel")
    e = pl.program_id(1)          # edge-chunk axis (reduction, innermost)

    @pl.when(e == 0)
    def _init():
        acc_ref[...] = jnp.zeros_like(acc_ref)

    # CSR-style chunk skipping: only chunks in [lo, hi] hold edges whose
    # (sorted) destination row falls inside this node block.
    @pl.when((e >= lo_ref[n]) & (e <= hi_ref[n]))
    def _compute():
        t_n = acc_ref.shape[1] if nodes_on_lanes else acc_ref.shape[0]
        t_e = x_ref.shape[1]

        x = x_ref[...]
        if n_edges % t_e != 0:
            # Final chunk is partial: zero value columns past the real edge
            # count so unspecified block padding (NaN/Inf) never reaches the MXU.
            col_ids = e * t_e + jax.lax.broadcasted_iota(jnp.int32, (1, t_e), 1)
            x = jnp.where(col_ids < n_edges, x, jnp.zeros_like(x))

        # One-hot (tN, tE): onehot[i, j] = 1 iff edge j targets node n*tN + i.
        node_ids = n * t_n + jax.lax.broadcasted_iota(jnp.int32, (t_n, 1), 0)
        onehot = (node_ids == rows_ref[...]).astype(x.dtype)

        if nodes_on_lanes:
            # (D, tE) x (tN, tE) contracting edges -> (D, tN): lane-dense when D < 128.
            acc_ref[...] += jax.lax.dot_general(
                x, onehot, (((1,), (1,)), ((), ())),
                preferred_element_type=jnp.float32)
        else:
            # (tN, tE) x (D, tE) contracting edges -> (tN, D): direct (N, D) layout.
            acc_ref[...] += jax.lax.dot_general(
                onehot, x, (((1,), (1,)), ((), ())),
                preferred_element_type=jnp.float32)

    @pl.when(e == pl.num_programs(1) - 1)
    def _finalize():
        out_ref[...] = acc_ref[...].astype(out_ref.dtype)


@functools.partial(jax.jit, static_argnames=("n_nodes",))
def special_spmm_final(edge, inputs, n_nodes):
    """h_prime[n, d] = sum_{e: edge[0,e]==n} inputs[d, e]  ->  (N, D)."""
    d, e_cnt = inputs.shape

    # --- static tile sizes ---------------------------------------------------
    # Edge chunk: 1024-wide (128-aligned) K tiles amortize per-grid-step
    # overhead and lengthen the MXU contraction; small E uses one full chunk.
    t_e = e_cnt if e_cnt <= 1024 else 1024
    num_chunks = pl.cdiv(e_cnt, t_e)

    # Node tile: >=128 for lane-dense stores, up to 512 to cut per-block cost;
    # prefer >=2 node blocks so the "parallel" axis can shard on v7x's 2 TCs.
    n_128 = _round_up(n_nodes, 128)
    t_n = min(512, n_128)
    if n_128 > 128 and n_128 // t_n < 2:
        t_n = max(128, (n_128 // 2) // 128 * 128)
    num_blocks = pl.cdiv(n_nodes, t_n)
    n_pad = num_blocks * t_n

    # --- sort edges by destination row (enables CSR chunk skipping) ----------
    rows = edge[0].astype(jnp.int32)
    order = jnp.argsort(rows)
    rows_sorted = rows[order]
    x_sorted = jnp.take(inputs, order, axis=1)

    # Per-node-block first/last edge-chunk indices (scalar-prefetched -> SMEM).
    bounds = jnp.arange(num_blocks + 1, dtype=jnp.int32) * t_n
    pos = jnp.searchsorted(rows_sorted, bounds, side="left").astype(jnp.int32)
    start, end = pos[:-1], pos[1:]
    chunk_lo = jnp.minimum(start // t_e, num_chunks - 1).astype(jnp.int32)
    chunk_hi = jnp.where(end > start, (end - 1) // t_e,
                         chunk_lo - 1).astype(jnp.int32)

    def edge_chunk_map(n, e, lo_ref, hi_ref):
        # Clamp to this node block's chunk range: skipped steps return the
        # previously fetched chunk index, so no new DMA is issued for them.
        lo = lo_ref[n]
        return 0, jnp.clip(e, lo, jnp.maximum(hi_ref[n], lo))

    nodes_on_lanes = (d < 128) or (d % 128 != 0)
    if nodes_on_lanes:
        out_block, out_shape_full = (d, t_n), (d, n_pad)
        out_map = lambda n, e, lo, hi: (0, n)
    else:
        out_block, out_shape_full = (t_n, d), (n_pad, d)
        out_map = lambda n, e, lo, hi: (n, 0)

    kernel = functools.partial(_scatter_sum_kernel, n_edges=e_cnt,
                               nodes_on_lanes=nodes_on_lanes)

    out = pl.pallas_call(
        kernel,
        out_shape=jax.ShapeDtypeStruct(out_shape_full, inputs.dtype),
        grid_spec=pltpu.PrefetchScalarGridSpec(
            num_scalar_prefetch=2,
            grid=(num_blocks, num_chunks),
            in_specs=[
                pl.BlockSpec((1, t_e), edge_chunk_map),   # sorted row indices
                pl.BlockSpec((d, t_e), edge_chunk_map),   # sorted edge values
            ],
            # Same output block across the edge sweep -> accumulator-resident.
            out_specs=pl.BlockSpec(out_block, out_map),
            scratch_shapes=[pltpu.VMEM(out_block, jnp.float32)],
        ),
        compiler_params=pltpu.CompilerParams(
            dimension_semantics=("parallel", "arbitrary")),
    )(chunk_lo, chunk_hi, rows_sorted.reshape(1, e_cnt), x_sorted)

    # Back to the module's (N, dimensions) layout.
    if nodes_on_lanes:
        return out[:, :n_nodes].T
    return out[:n_nodes, :]


class RegularizedAtt:
    """JAX/Pallas port of End2End.models.RegularizedAtt."""

    def __init__(self, dimensions, key):
        self.dimensions = dimensions
        # xavier_normal_ on a (1, dimensions) tensor with gain=1.414
        fan_in, fan_out = dimensions, 1
        std = 1.414 * (2.0 / (fan_in + fan_out)) ** 0.5
        self.W = std * jax.random.normal(key, (1, dimensions), jnp.float32)
        # dropout(p=0) and LeakyReLU(0.2) are unused in forward().

    def __call__(self, inputs, edge, n_nodes, *, check_nan=False):
        # inputs: (dimensions, E); edge: (2, E); returns (N, dimensions)
        h_prime = special_spmm_final(edge, inputs, n_nodes)
        if check_nan:  # debug-only: forces a host sync
            assert not bool(jnp.isnan(h_prime).any())
        return h_prime


if __name__ == "__main__":
    key = jax.random.PRNGKey(0)
    k_w, k_x, k_e, k_x2, k_e2, k_x3, k_e3 = jax.random.split(key, 7)

    # 1) Small case matching the module's typical use (single chunk / block).
    dimensions, n_nodes, n_edges = 32, 16, 40
    inputs = jax.random.normal(k_x, (dimensions, n_edges), jnp.float32)
    edge = jax.random.randint(k_e, (2, n_edges), 0, n_nodes, jnp.int32)

    model = RegularizedAtt(dimensions, k_w)
    h_prime = jax.block_until_ready(model(inputs, edge, n_nodes))
    ref = jax.ops.segment_sum(inputs.T, edge[0], num_segments=n_nodes)
    assert h_prime.shape == (n_nodes, dimensions)
    assert jnp.allclose(h_prime, ref, atol=1e-5, rtol=1e-5)

    # 2) Multi node-block / multi edge-chunk / partial-tail path (D < 128).
    d2, n2, e2 = 64, 300, 3000
    inputs2 = jax.random.normal(k_x2, (d2, e2), jnp.float32)
    edge2 = jax.random.randint(k_e2, (2, e2), 0, n2, jnp.int32)
    out2 = jax.block_until_ready(special_spmm_final(edge2, inputs2, n2))
    ref2 = jax.ops.segment_sum(inputs2.T, edge2[0], num_segments=n2)
    assert out2.shape == (n2, d2)
    assert jnp.allclose(out2, ref2, atol=1e-4, rtol=1e-4)

    # 3) D >= 128: direct (N, D) output layout (no wrapper transpose).
    d3, n3, e3 = 128, 300, 3000
    inputs3 = jax.random.normal(k_x3, (d3, e3), jnp.float32)
    edge3 = jax.random.randint(k_e3, (2, e3), 0, n3, jnp.int32)
    out3 = jax.block_until_ready(special_spmm_final(edge3, inputs3, n3))
    ref3 = jax.ops.segment_sum(inputs3.T, edge3[0], num_segments=n3)
    assert out3.shape == (n3, d3)
    assert jnp.allclose(out3, ref3, atol=1e-4, rtol=1e-4)

    print("KERNEL_OK")
</pallas_src>

<mosaic_0001>
module attributes {stable_mosaic.version = 11 : i64} {
  func.func @_scatter_sum_kernel(%arg0: i32, %arg1: i32, %arg2: memref<1xi32, #tpu.memory_space<smem>>, %arg3: memref<1xi32, #tpu.memory_space<smem>>, %arg4: memref<1x40xi32, #tpu.memory_space<vmem>>, %arg5: memref<32x40xf32, #tpu.memory_space<vmem>>, %arg6: memref<32x128xf32, #tpu.memory_space<vmem>>, %arg7: memref<32x128xf32, #tpu.memory_space<vmem>>) attributes {dimension_semantics = [#tpu.dimension_semantics<parallel>, #tpu.dimension_semantics<arbitrary>], iteration_bounds = array<i64: 1, 1>, scalar_prefetch = 2 : i64, scratch_operands = 1 : i64, tpu.core_type = #tpu.core_type<tc>, window_params = [{transform_indices = @transform_0, window_bounds = array<i64: 1, 40>}, {transform_indices = @transform_1, window_bounds = array<i64: 32, 40>}, {transform_indices = @transform_2, window_bounds = array<i64: 32, 128>}]} {
    %c0_i32 = arith.constant 0 : i32
    %0 = arith.cmpi eq, %arg1, %c0_i32 : i32
    %1 = arith.extui %0 : i1 to i32
    %c0_i32_0 = arith.constant 0 : i32
    %2 = arith.cmpi ne, %1, %c0_i32_0 : i32
    scf.if %2 {
      %cst = arith.constant 0.000000e+00 : f32
      %15 = vector.broadcast %cst : f32 to vector<32x128xf32>
      %c0 = arith.constant 0 : index
      %c0_4 = arith.constant 0 : index
      %16 = vector.load %arg7[%c0, %c0_4] : memref<32x128xf32, #tpu.memory_space<vmem>>, vector<32x128xf32>
      tpu.vector_store %arg7[%c0, %c0_4], %15 {strides = array<i32>} : memref<32x128xf32, #tpu.memory_space<vmem>>, vector<32x128xf32>,
    } else {
    }
    %3 = arith.index_cast %arg0 : i32 to index
    %4 = memref.load %arg2[%3] : memref<1xi32, #tpu.memory_space<smem>>
    %5 = arith.cmpi sge, %arg1, %4 : i32
    %6 = arith.index_cast %arg0 : i32 to index
    %7 = memref.load %arg3[%6] : memref<1xi32, #tpu.memory_space<smem>>
    %8 = arith.cmpi sle, %arg1, %7 : i32
    %9 = arith.andi %5, %8 : i1
    %10 = arith.extui %9 : i1 to i32
    %c0_i32_1 = arith.constant 0 : i32
    %11 = arith.cmpi ne, %10, %c0_i32_1 : i32
    scf.if %11 {
      %c0 = arith.constant 0 : index
      %c0_4 = arith.constant 0 : index
      %15 = vector.load %arg5[%c0, %c0_4] : memref<32x40xf32, #tpu.memory_space<vmem>>, vector<32x40xf32>
      %c128_i32 = arith.constant 128 : i32
      %16 = arith.muli %arg0, %c128_i32 : i32
      %17 = tpu.iota {dimensions = array<i32: 0>} : vector<128x1xi32>
      %18 = vector.broadcast %16 : i32 to vector<128x1xi32>
      %19 = arith.addi %18, %17 : vector<128x1xi32>
      %c0_5 = arith.constant 0 : index
      %c0_6 = arith.constant 0 : index
      %20 = vector.load %arg4[%c0_5, %c0_6] : memref<1x40xi32, #tpu.memory_space<vmem>>, vector<1x40xi32>
      %21 = vector.broadcast %19 : vector<128x1xi32> to vector<128x40xi32>
      %22 = vector.broadcast %20 : vector<1x40xi32> to vector<128x40xi32>
      %23 = arith.cmpi eq, %21, %22 : vector<128x40xi32>
      %24 = arith.extui %23 : vector<128x40xi1> to vector<128x40xi32>
      %25 = arith.sitofp %24 : vector<128x40xi32> to vector<128x40xf32>
      %c0_7 = arith.constant 0 : index
      %c0_8 = arith.constant 0 : index
      %26 = vector.load %arg7[%c0_7, %c0_8] : memref<32x128xf32, #tpu.memory_space<vmem>>, vector<32x128xf32>
      %cst = arith.constant dense<0.000000e+00> : vector<32x128xf32>
      %27 = tpu.matmul %15, %25, %cst {dimension_numbers = #tpu.dot_dimension_numbers<[1], [1], [0], [0], [0, 0, 1, 0], [], []>} : vector<32x40xf32>, vector<128x40xf32>, vector<32x128xf32> -> vector<32x128xf32>
      %28 = arith.addf %26, %27 : vector<32x128xf32>
      %c0_9 = arith.constant 0 : index
      %c0_10 = arith.constant 0 : index
      %29 = vector.load %arg7[%c0_9, %c0_10] : memref<32x128xf32, #tpu.memory_space<vmem>>, vector<32x128xf32>
      tpu.vector_store %arg7[%c0_9, %c0_10], %28 {strides = array<i32>} : memref<32x128xf32, #tpu.memory_space<vmem>>, vector<32x128xf32>,
    } else {
    }
    %c0_i32_2 = arith.constant 0 : i32
    %12 = arith.cmpi eq, %arg1, %c0_i32_2 : i32
    %13 = arith.extui %12 : i1 to i32
    %c0_i32_3 = arith.constant 0 : i32
    %14 = arith.cmpi ne, %13, %c0_i32_3 : i32
    scf.if %14 {
      %c0 = arith.constant 0 : index
      %c0_4 = arith.constant 0 : index
      %15 = vector.load %arg7[%c0, %c0_4] : memref<32x128xf32, #tpu.memory_space<vmem>>, vector<32x128xf32>
      %c0_5 = arith.constant 0 : index
      %c0_6 = arith.constant 0 : index
      %16 = vector.load %arg6[%c0_5, %c0_6] : memref<32x128xf32, #tpu.memory_space<vmem>>, vector<32x128xf32>
      tpu.vector_store %arg6[%c0_5, %c0_6], %15 {strides = array<i32>} : memref<32x128xf32, #tpu.memory_space<vmem>>, vector<32x128xf32>,
    } else {
    }
    return
  }
  func.func @transform_0(%arg0: i32, %arg1: i32, %arg2: memref<1xi32, #tpu.memory_space<smem>>, %arg3: memref<1xi32, #tpu.memory_space<smem>>) -> (i32, i32) {
    %0 = arith.index_cast %arg0 : i32 to index
    %1 = memref.load %arg2[%0] : memref<1xi32, #tpu.memory_space<smem>>
    %2 = arith.index_cast %arg0 : i32 to index
    %3 = memref.load %arg3[%2] : memref<1xi32, #tpu.memory_space<smem>>
    %4 = arith.maxsi %3, %1 : i32
    %5 = arith.maxsi %1, %arg1 : i32
    %6 = arith.minsi %4, %5 : i32
    %c0_i32 = arith.constant 0 : i32
    %c0_i32_0 = arith.constant 0 : i32
    return %c0_i32, %6 : i32, i32
  }
  func.func @transform_1(%arg0: i32, %arg1: i32, %arg2: memref<1xi32, #tpu.memory_space<smem>>, %arg3: memref<1xi32, #tpu.memory_space<smem>>) -> (i32, i32) {
    %0 = arith.index_cast %arg0 : i32 to index
    %1 = memref.load %arg2[%0] : memref<1xi32, #tpu.memory_space<smem>>
    %2 = arith.index_cast %arg0 : i32 to index
    %3 = memref.load %arg3[%2] : memref<1xi32, #tpu.memory_space<smem>>
    %4 = arith.maxsi %3, %1 : i32
    %5 = arith.maxsi %1, %arg1 : i32
    %6 = arith.minsi %4, %5 : i32
    %c0_i32 = arith.constant 0 : i32
    %c0_i32_0 = arith.constant 0 : i32
    return %c0_i32, %6 : i32, i32
  }
  func.func @transform_2(%arg0: i32, %arg1: i32, %arg2: memref<1xi32, #tpu.memory_space<smem>>, %arg3: memref<1xi32, #tpu.memory_space<smem>>) -> (i32, i32) {
    %c0_i32 = arith.constant 0 : i32
    %c0_i32_0 = arith.constant 0 : i32
    return %c0_i32, %arg0 : i32, i32
  }
}

</mosaic_0001>

<llo_original>
// kernel: custom-call.1
$region0: #{custom-call.1}
  %s0 = inlined_call_operand.vmem [shape: u32[2], index: 0, kind: output, shape index: {}]

// kernel: special_spmm_final.1
$region0: #{special_spmm_final.1}
  #allocation0 [shape = 'u32[]', space=smem, size = 0x4, offset = 0x4, fixed_abs, tag = 'smem constant byte address 0x4 - core index']
  #allocation1 [shape = 'u32[144,128]{1,0:T(1,128)}', space=vmem, size = 0x12000, scoped, tag = 'internal scratch']
  #allocation2 [shape = 'f32[32,128]{1,0:T(8,128)}', space=vmem, size = 0x4000, scoped, tag = 'scratch operand']
  #allocation3 [shape = 's32[1]{0}', space=sflag, size = 0x4, scoped, tag = 'scoped memory for special_spmm_final.1']
  #allocation4 [shape = 's32[1]{0:T(128)S(6)}', space=smem, size = 0x200, scoped, tag = 'prefetched SMEM operand 0']
  #allocation5 [shape = 's32[1]{0:T(128)S(6)}', space=smem, size = 0x200, scoped, tag = 'prefetched SMEM operand 1']
  %s0 = inlined_call_operand.<no memory space> [shape: s32[1], index: 0, kind: input, shape index: {}]
  %s1 = inlined_call_operand.<no memory space> [shape: s32[1], index: 1, kind: input, shape index: {}]
  %s2 = inlined_call_operand.vmem [shape: s32[1,40], index: 2, kind: input, shape index: {}]
  %s3 = inlined_call_operand.vmem [shape: f32[32,40], index: 3, kind: input, shape index: {}]
  %s4 = inlined_call_operand.vmem [shape: f32[32,128], index: 4, kind: output, shape index: {}]
  %s5 = sld [smem:[#allocation0]]
  $region30: #{special_spmm_final.1} parent=0
    _
  %s7 = ssub.s32 1, %s5
  %s8 = scalar_select 0, %s7, %s5
  %9 = sst [smem:[#allocation4]] %s0
  %10 = sst [smem:[#allocation5]] %s1
  // Predicated region
  $region2: #{special_spmm_final.1} parent=0 // pred_check
    _
  $region3: #{special_spmm_final.1} parent=0 // pred_check_branch
    %12 = sbr.rel (0) target = $region5
  $region4: #{special_spmm_final.1} parent=0 // pred_region
    %s13 = sld [smem:[#allocation4]]
    %s14 = sld [smem:[#allocation5]]
    %p15 = scmp.gt.s32.totalorder %s14, %s13
    %s16 = scalar_select %p15, %s14, %s13
    %p17 = scmp.gt.s32.totalorder %s13, 0
    %s18 = scalar_select %p17, %s13, 0
    %p19 = scmp.lt.s32.totalorder %s16, %s18
    %s20 = scalar_select %p19, %s16, %s18
    %p21 = scmp.lt.s32.totalorder %s20, 0
    %s22 = scalar_select %p21, %s20, 0
    %s23 = scalar_lea.vmem %s2, %s22
    %s24 = sld [smem:[#allocation4]]
    %s25 = sld [smem:[#allocation5]]
    %p26 = scmp.gt.s32.totalorder %s25, %s24
    %s27 = scalar_select %p26, %s25, %s24
    %p28 = scmp.gt.s32.totalorder %s24, 0
    %s29 = scalar_select %p28, %s24, 0
    %p30 = scmp.lt.s32.totalorder %s27, %s29
    %s31 = scalar_select %p30, %s27, %s29
  $region5: #{special_spmm_final.1} parent=0 // pred_fallthru
    _
  // Predicated region
  $region6: #{special_spmm_final.1} parent=0 // pred_check
    _
  $region7: #{special_spmm_final.1} parent=0 // pred_check_branch
    %33 = sbr.rel (0) target = $region9
  $region8: #{special_spmm_final.1} parent=0 // pred_region
    %s34 = sld [smem:[#allocation4]]
    %s35 = sld [smem:[#allocation5]]
    %p36 = scmp.gt.s32.totalorder %s35, %s34
    %s37 = scalar_select %p36, %s35, %s34
    %p38 = scmp.gt.s32.totalorder %s34, 0
    %s39 = scalar_select %p38, %s34, 0
    %p40 = scmp.lt.s32.totalorder %s37, %s39
    %s41 = scalar_select %p40, %s37, %s39
    %p42 = scmp.lt.s32.totalorder %s41, 0
    %s43 = scalar_select %p42, %s41, 0
    %s44 = smul.addr %s43, 8
    %s45 = scalar_lea.vmem %s3, %s44
    %s46 = sld [smem:[#allocation4]]
    %s47 = sld [smem:[#allocation5]]
    %p48 = scmp.gt.s32.totalorder %s47, %s46
    %s49 = scalar_select %p48, %s47, %s46
    %p50 = scmp.gt.s32.totalorder %s46, 0
    %s51 = scalar_select %p50, %s46, 0
    %p52 = scmp.lt.s32.totalorder %s49, %s51
    %s53 = scalar_select %p52, %s49, %s51
  $region9: #{special_spmm_final.1} parent=0 // pred_fallthru
    _
  %s54 = sld [smem:[#allocation4]]
  %s55 = sld [smem:[#allocation5]]
  %p56 = scmp.gt.s32.totalorder %s55, %s54
  %s57 = scalar_select %p56, %s55, %s54
  %p58 = scmp.gt.s32.totalorder %s54, 0
  %s59 = scalar_select %p58, %s54, 0
  %p60 = scmp.lt.s32.totalorder %s57, %s59
  %s61 = scalar_select %p60, %s57, %s59
  %p62 = scmp.lt.s32.totalorder %s61, 0
  %s63 = scalar_select %p62, %s61, 0
  %s64 = scalar_lea.vmem %s2, %s63
  %s65 = sld [smem:[#allocation4]]
  %s66 = sld [smem:[#allocation5]]
  %p67 = scmp.gt.s32.totalorder %s66, %s65
  %s68 = scalar_select %p67, %s66, %s65
  %p69 = scmp.gt.s32.totalorder %s65, 0
  %s70 = scalar_select %p69, %s65, 0
  %p71 = scmp.lt.s32.totalorder %s68, %s70
  %s72 = scalar_select %p71, %s68, %s70
  %p73 = scmp.lt.s32.totalorder %s72, 0
  %s74 = scalar_select %p73, %s72, 0
  %s75 = smul.addr %s74, 8
  %s76 = scalar_lea.vmem %s3, %s75
  %s77 = sld [smem:[#allocation4]]
  %s78 = sld [smem:[#allocation5]]
  %p79 = scmp.gt.s32.totalorder %s78, %s77
  %s80 = scalar_select %p79, %s78, %s77
  %p81 = scmp.gt.s32.totalorder %s77, 0
  %s82 = scalar_select %p81, %s77, 0
  %p83 = scmp.lt.s32.totalorder %s80, %s82
  %s84 = scalar_select %p83, %s80, %s82
  %p85 = scmp.lt.s32.totalorder %s84, 0
  %s86 = scalar_select %p85, %s84, 0
  %s87 = scalar_lea.vmem %s2, %s86
  %s88 = sld [smem:[#allocation4]]
  %s89 = sld [smem:[#allocation5]]
  %p90 = scmp.gt.s32.totalorder %s89, %s88
  %s91 = scalar_select %p90, %s89, %s88
  %p92 = scmp.gt.s32.totalorder %s88, 0
  %s93 = scalar_select %p92, %s88, 0
  %p94 = scmp.lt.s32.totalorder %s91, %s93
  %s95 = scalar_select %p94, %s91, %s93
  %s96 = sld [smem:[#allocation4]]
  %s97 = sld [smem:[#allocation5]]
  %p98 = scmp.gt.s32.totalorder %s97, %s96
  %s99 = scalar_select %p98, %s97, %s96
  %p100 = scmp.gt.s32.totalorder %s96, 0
  %s101 = scalar_select %p100, %s96, 0
  %p102 = scmp.lt.s32.totalorder %s99, %s101
  %s103 = scalar_select %p102, %s99, %s101
  %p104 = scmp.lt.s32.totalorder %s103, 0
  %s105 = scalar_select %p104, %s103, 0
  %s106 = smul.addr %s105, 8
  %s107 = scalar_lea.vmem %s3, %s106
  %s108 = sld [smem:[#allocation4]]
  %s109 = sld [smem:[#allocation5]]
  %p110 = scmp.gt.s32.totalorder %s109, %s108
  %s111 = scalar_select %p110, %s109, %s108
  %p112 = scmp.gt.s32.totalorder %s108, 0
  %s113 = scalar_select %p112, %s108, 0
  %p114 = scmp.lt.s32.totalorder %s111, %s113
  %s115 = scalar_select %p114, %s111, %s113
  %p116 = scmp.eq.s32.totalorder 0, 0
  // Predicated region
  $region10: #{special_spmm_final.1} parent=0 // pred_check
    %p117 = pneg %p116
  $region11: #{special_spmm_final.1} parent=0 // pred_check_branch
    %119 = sbr.rel (%p117) target = $region13
  $region12: #{special_spmm_final.1} parent=0 // pred_region
    %120 = vst [vmem:[#allocation2] sm:$0xff] 0.0
    %121 = vst [vmem:[#allocation2 + $0x8] sm:$0xff] 0.0
    %122 = vst [vmem:[#allocation2 + $0x10] sm:$0xff] 0.0
    %123 = vst [vmem:[#allocation2 + $0x18] sm:$0xff] 0.0
  $region13: #{special_spmm_final.1} parent=0 // pred_fallthru
    _
  %s124 = sld [smem:[#allocation4]]
  %p125 = scmp.ge.s32.totalorder 0, %s124
  %s126 = sld [smem:[#allocation5]]
  %p127 = scmp.le.s32.totalorder 0, %s126
  %p128 = pnand %p125, %p127
  %p129 = pneg %p128
  // Predicated region
  $region14: #{special_spmm_final.1} parent=0 // pred_check
    _
  $region15: #{special_spmm_final.1} parent=0 // pred_check_branch
    %131 = sbr.rel (%p128) target = $region17
  $region16: #{special_spmm_final.1} parent=0 // pred_region
    %v132 = vld [vmem:[%s107] sm:$0xff]
    %v133 = vld [vmem:[%s107 + $0x8] sm:$0xff]
    %v134 = vld [vmem:[%s107 + $0x10] sm:$0xff]
    %v135 = vld [vmem:[%s107 + $0x18] sm:$0xff]
    %s136 = smul.u32 0, 128
    %v137 = vlaneseq
    %v138 = vshrl.u32 %v137, 7
    %v139 = vadd.s32 %v138, 8
    %v140 = vadd.s32 %v138, 16
    %v141 = vadd.s32 %v138, 24
    %v142 = vadd.s32 %v138, 32
    %v143 = vadd.s32 %v138, 40
    %v144 = vadd.s32 %v138, 48
    %v145 = vadd.s32 %v138, 56
    %v146 = vadd.s32 %v138, 64
    %v147 = vadd.s32 %v138, 72
    %v148 = vadd.s32 %v138, 80
    %v149 = vadd.s32 %v138, 88
    %v150 = vadd.s32 %v138, 96
    %v151 = vadd.s32 %v138, 104
    %v152 = vadd.s32 %v138, 112
    %v153 = vadd.s32 %v138, 120
    %v154 = vstv %s136
    %v155 = vadd.s32 %v154, %v138
    %v156 = vadd.s32 %v154, %v139
    %v157 = vadd.s32 %v154, %v140
    %v158 = vadd.s32 %v154, %v141
    %v159 = vadd.s32 %v154, %v142
    %v160 = vadd.s32 %v154, %v143
    %v161 = vadd.s32 %v154, %v144
    %v162 = vadd.s32 %v154, %v145
    %v163 = vadd.s32 %v154, %v146
    %v164 = vadd.s32 %v154, %v147
    %v165 = vadd.s32 %v154, %v148
    %v166 = vadd.s32 %v154, %v149
    %v167 = vadd.s32 %v154, %v150
    %v168 = vadd.s32 %v154, %v151
    %v169 = vadd.s32 %v154, %v152
    %v170 = vadd.s32 %v154, %v153
    %v171 = vld [vmem:[%s87] sm:$0x1]
    %v172 = vlaneseq
    %v173 = vshrl.u32 %v172, 7
    %v174 = vsub.s32 0, %v173
    %v175 = vrot.slane %v171, %v174
    %vm176 = vcmp.eq.s32.totalorder %v155, %v175
    %vm177 = vcmp.eq.s32.totalorder %v156, %v175
    %vm178 = vcmp.eq.s32.totalorder %v157, %v175
    %vm179 = vcmp.eq.s32.totalorder %v158, %v175
    %vm180 = vcmp.eq.s32.totalorder %v159, %v175
    %vm181 = vcmp.eq.s32.totalorder %v160, %v175
    %vm182 = vcmp.eq.s32.totalorder %v161, %v175
    %vm183 = vcmp.eq.s32.totalorder %v162, %v175
    %vm184 = vcmp.eq.s32.totalorder %v163, %v175
    %vm185 = vcmp.eq.s32.totalorder %v164, %v175
    %vm186 = vcmp.eq.s32.totalorder %v165, %v175
    %vm187 = vcmp.eq.s32.totalorder %v166, %v175
    %vm188 = vcmp.eq.s32.totalorder %v167, %v175
    %vm189 = vcmp.eq.s32.totalorder %v168, %v175
    %vm190 = vcmp.eq.s32.totalorder %v169, %v175
    %vm191 = vcmp.eq.s32.totalorder %v170, %v175
    %v192 = vsel %vm176, 1, 0
    %v193 = vsel %vm177, 1, 0
    %v194 = vsel %vm178, 1, 0
    %v195 = vsel %vm179, 1, 0
    %v196 = vsel %vm180, 1, 0
    %v197 = vsel %vm181, 1, 0
    %v198 = vsel %vm182, 1, 0
    %v199 = vsel %vm183, 1, 0
    %v200 = vsel %vm184, 1, 0
    %v201 = vsel %vm185, 1, 0
    %v202 = vsel %vm186, 1, 0
    %v203 = vsel %vm187, 1, 0
    %v204 = vsel %vm188, 1, 0
    %v205 = vsel %vm189, 1, 0
    %v206 = vsel %vm190, 1, 0
    %v207 = vsel %vm191, 1, 0
    %v208 = vcvt.s32.f32 %v192
    %v209 = vcvt.s32.f32 %v193
    %v210 = vcvt.s32.f32 %v194
    %v211 = vcvt.s32.f32 %v195
    %v212 = vcvt.s32.f32 %v196
    %v213 = vcvt.s32.f32 %v197
    %v214 = vcvt.s32.f32 %v198
    %v215 = vcvt.s32.f32 %v199
    %v216 = vcvt.s32.f32 %v200
    %v217 = vcvt.s32.f32 %v201
    %v218 = vcvt.s32.f32 %v202
    %v219 = vcvt.s32.f32 %v203
    %v220 = vcvt.s32.f32 %v204
    %v221 = vcvt.s32.f32 %v205
    %v222 = vcvt.s32.f32 %v206
    %v223 = vcvt.s32.f32 %v207
    %v224 = vld [vmem:[#allocation2] sm:$0xff]
    %v225 = vld [vmem:[#allocation2 + $0x8] sm:$0xff]
    %v226 = vld [vmem:[#allocation2 + $0x10] sm:$0xff]
    %v227 = vld [vmem:[#allocation2 + $0x18] sm:$0xff]
    %vm228 = vcmask 326656
    %v230 = vsel %vm228, %v132, 0
    %v233 = vsel %vm228, %v133, 0
    %v236 = vsel %vm228, %v134, 0
    %v239 = vsel %vm228, %v135, 0
    %v242 = vsel %vm228, %v208, 0
    %v245 = vsel %vm228, %v209, 0
    %v248 = vsel %vm228, %v210, 0
    %v251 = vsel %vm228, %v211, 0
    %v254 = vsel %vm228, %v212, 0
    %v257 = vsel %vm228, %v213, 0
    %v260 = vsel %vm228, %v214, 0
    %v263 = vsel %vm228, %v215, 0
    %v266 = vsel %vm228, %v216, 0
    %v269 = vsel %vm228, %v217, 0
    %v272 = vsel %vm228, %v218, 0
    %v275 = vsel %vm228, %v219, 0
    %v278 = vsel %vm228, %v220, 0
    %v281 = vsel %vm228, %v221, 0
    %v284 = vsel %vm228, %v222, 0
    %v287 = vsel %vm228, %v223, 0
    %289 = vmatprep.subr.mxu0 0.0
    %290 = vmatpush1.xpose.msra.mxu0 %v242
    %291 = vmatprep.subr.mxu0 0.0
    %292 = vmatpush1.xpose.msra.mxu0 %v245
    %293 = vmatprep.subr.mxu0 0.0
    %294 = vmatpush1.xpose.msra.mxu0 %v248
    %295 = vmatprep.subr.mxu0 0.0
    %296 = vmatpush1.xpose.msra.mxu0 %v251
    %297 = vmatprep.subr.mxu0 0.0
    %298 = vmatpush1.xpose.msra.mxu0 %v254
    %299 = vmatprep.subr.mxu0 0.0
    %300 = vmatpush1.xpose.msra.mxu0 %v257
    %301 = vmatprep.subr.mxu0 0.0
    %302 = vmatpush1.xpose.msra.mxu0 %v260
    %303 = vmatprep.subr.mxu0 0.0
    %304 = vmatpush1.xpose.msra.mxu0 %v263
    %305 = vmatprep.subr.mxu0 0.0
    %306 = vmatpush1.xpose.msra.mxu0 %v266
    %307 = vmatprep.subr.mxu0 0.0
    %308 = vmatpush1.xpose.msra.mxu0 %v269
    %309 = vmatprep.subr.mxu0 0.0
    %310 = vmatpush1.xpose.msra.mxu0 %v272
    %311 = vmatprep.subr.mxu0 0.0
    %312 = vmatpush1.xpose.msra.mxu0 %v275
    %313 = vmatprep.subr.mxu0 0.0
    %314 = vmatpush1.xpose.msra.mxu0 %v278
    %315 = vmatprep.subr.mxu0 0.0
    %316 = vmatpush1.xpose.msra.mxu0 %v281
    %317 = vmatprep.subr.mxu0 0.0
    %318 = vmatpush1.xpose.msra.mxu0 %v284
    %319 = vmatprep.subr.mxu0 0.0
    %320 = vmatpush1.xpose.msra.mxu0 %v287
    %321 = vmatprep.subr.mxu0 0.0
    %322 = vmatpush1.xpose.msra.mxu0 0.0
    %323 = vmatprep.subr.mxu0 0.0
    %324 = vmatpush1.xpose.msra.mxu0 0.0
    %325 = vmatprep.subr.mxu0 0.0
    %326 = vmatpush1.xpose.msra.mxu0 0.0
    %327 = vmatprep.subr.mxu0 0.0
    %328 = vmatpush1.xpose.msra.mxu0 0.0
    %329 = vmatprep.subr.mxu0 0.0
    %330 = vmatpush1.xpose.msra.mxu0 0.0
    %331 = vmatprep.subr.mxu0 0.0
    %332 = vmatpush1.xpose.msra.mxu0 0.0
    %333 = vmatprep.subr.mxu0 0.0
    %334 = vmatpush1.xpose.msra.mxu0 0.0
    %335 = vmatprep.subr.mxu0 0.0
    %336 = vmatpush1.xpose.msra.mxu0 0.0
    %337 = vmatprep.subr.mxu0 0.0
    %338 = vmatpush1.xpose.msra.mxu0 0.0
    %339 = vmatprep.subr.mxu0 0.0
    %340 = vmatpush1.xpose.msra.mxu0 0.0
    %341 = vmatprep.subr.mxu0 0.0
    %342 = vmatpush1.xpose.msra.mxu0 0.0
    %343 = vmatprep.subr.mxu0 0.0
    %344 = vmatpush1.xpose.msra.mxu0 0.0
    %345 = vmatprep.subr.mxu0 0.0
    %346 = vmatpush1.xpose.msra.mxu0 0.0
    %347 = vmatprep.subr.mxu0 0.0
    %348 = vmatpush1.xpose.msra.mxu0 0.0
    %349 = vmatprep.subr.mxu0 0.0
    %350 = vmatpush1.xpose.msra.mxu0 0.0
    %351 = vmatprep.subr.mxu0 0.0
    %352 = vmatpush1.xpose.msra.mxu0 0.0
    %353 = vmatprep.mubr.f32.mxu0 0.0
    %354 = vmatmul.mubr.f32.gmra.mrb[0].mxu0 %v230
    %v355 = vpop.f32.mrb[0].mxu0
    %v356 = vadd.f32 0.0, %v355
    %v357 = vpop.f32.mrb[0].mxu0
    %358 = vmatprep.mubr.f32.mxu0 0.0
    %359 = vmatmul.mubr.f32.gmra.mrb[0].mxu0 %v233
    %v360 = vpop.f32.mrb[0].mxu0
    %v361 = vadd.f32 0.0, %v360
    %v362 = vpop.f32.mrb[0].mxu0
    %363 = vmatprep.mubr.f32.mxu0 0.0
    %364 = vmatmul.mubr.f32.gmra.mrb[0].mxu0 %v236
    %v365 = vpop.f32.mrb[0].mxu0
    %v366 = vadd.f32 0.0, %v365
    %v367 = vpop.f32.mrb[0].mxu0
    %368 = vmatprep.mubr.f32.mxu0 0.0
    %369 = vmatmul.mubr.f32.gmra.mrb[0].mxu0 %v239
    %v370 = vpop.f32.mrb[0].mxu0
    %v371 = vadd.f32 0.0, %v370
    %v372 = vpop.f32.mrb[0].mxu0
    %373 = vdwg.mxu0
    %v374 = vadd.f32 %v224, %v356
    %v375 = vadd.f32 %v225, %v361
    %v376 = vadd.f32 %v226, %v366
    %v377 = vadd.f32 %v227, %v371
    %378 = vst [vmem:[#allocation2] sm:$0xff] %v374
    %379 = vst [vmem:[#allocation2 + $0x8] sm:$0xff] %v375
    %380 = vst [vmem:[#allocation2 + $0x10] sm:$0xff] %v376
    %381 = vst [vmem:[#allocation2 + $0x18] sm:$0xff] %v377
  $region17: #{special_spmm_final.1} parent=0 // pred_fallthru
    _
  // Predicated region
  $region18: #{special_spmm_final.1} parent=0 // pred_check
    %p382 = pneg %p116
  $region19: #{special_spmm_final.1} parent=0 // pred_check_branch
    %384 = sbr.rel (%p382) target = $region21
  $region20: #{special_spmm_final.1} parent=0 // pred_region
    %v385 = vld [vmem:[#allocation2] sm:$0xff]
    %v386 = vld [vmem:[#allocation2 + $0x8] sm:$0xff]
    %v387 = vld [vmem:[#allocation2 + $0x10] sm:$0xff]
    %v388 = vld [vmem:[#allocation2 + $0x18] sm:$0xff]
    %389 = vst [vmem:[%s4] sm:$0xff] %v385
    %390 = vst [vmem:[%s4 + $0x8] sm:$0xff] %v386
    %391 = vst [vmem:[%s4 + $0x10] sm:$0xff] %v387
    %392 = vst [vmem:[%s4 + $0x18] sm:$0xff] %v388
  $region21: #{special_spmm_final.1} parent=0 // pred_fallthru
    _
  // Predicated region
  $region22: #{special_spmm_final.1} parent=0 // pred_check
    _
  $region23: #{special_spmm_final.1} parent=0 // pred_check_branch
    %394 = sbr.rel (0) target = $region25
  $region24: #{special_spmm_final.1} parent=0 // pred_region
    _
  $region25: #{special_spmm_final.1} parent=0 // pred_fallthru
    _
  // Predicated region
  $region26: #{special_spmm_final.1} parent=0 // pred_check
    _
  $region27: #{special_spmm_final.1} parent=0 // pred_check_branch
    %396 = sbr.rel (0) target = $region29
  $region28: #{special_spmm_final.1} parent=0 // pred_region
    _
  $region29: #{special_spmm_final.1} parent=0 // pred_fallthru
    _

</llo_original>
